<compile_context>
chip_gen: v6e
topology: v6e:2x2x1
jax: 0.10.0
libtpu: 0.0.40
codegen_flags: <defaults>
</compile_context>

<pallas_src>
import jax
import jax.numpy as jnp
from jax.experimental import pallas as pl
from jax.experimental.pallas import tpu as pltpu


_TILE_BYTES = 4 << 20          # ~4 MiB per tile buffer (2048 rows x 512 cols f32)
_VMEM_LIMIT_BYTES = 32 << 20   # 2 (in/out) x 2 (double-buffer) x 4 MiB = 16 MiB + headroom
_MIN_PALLAS_ELEMS = 1 << 20    # 4 MiB of f32; below this XLA fusion already hits HBM roofline


def _fused_affine_kernel(params_ref, x_ref, o_ref):
    # params_ref lives in SMEM: [w, b] with w = w1*w2, b = b1*w2 + b2.
    w = params_ref[0]
    b = params_ref[1]
    o_ref[...] = x_ref[...] * w + b


def _round_up(x, m):
    return (x + m - 1) // m * m


def _pick_cols(total, last_dim):
    """Lane-dense (multiple-of-128) last dim reachable by a zero-copy reshape.

    Returns 0 if no such factorization exists (caller falls back to XLA path).
    """
    if last_dim % 128 == 0 and last_dim <= 4096:
        return last_dim                       # (N*C*H, W) view, zero-copy
    for c in (2048, 1024, 512, 256, 128):
        if total % c == 0:
            return c                          # flat (total//c, c) view, zero-copy
    return 0


def toy_model_forward(x, w1, b1, w2, b2, *, min_pallas_elems=_MIN_PALLAS_ELEMS):
    """conv2(conv1(x)) for two Conv2d(1, 1, 1): out = (x*w1+b1)*w2 + b2.

    x: (N, 1, H, W) float32 (NCHW). Returns same shape/dtype.
    """
    N, C, H, W = x.shape
    assert C == 1, "ToyModel convs expect 1 input channel"

    # Fold the two affine (1x1, 1->1 channel) convs into a single FMA.
    w = (w1 * w2).astype(jnp.float32)
    b = (b1 * w2 + b2).astype(jnp.float32)

    total = N * C * H * W
    cols = _pick_cols(total, W)

    # Small inputs, or shapes with no zero-copy lane-dense view: plain XLA
    # fusion (already at HBM roofline, no wrapper pad/slice copies).
    if total < min_pallas_elems or cols == 0:
        return x * w + b

    rows = total // cols
    # ~4 MiB tile, rows rounded to a sublane multiple (8); never exceed the array.
    tile_rows = max(8, min(_round_up(rows, 8), (_TILE_BYTES // (cols * 4)) // 8 * 8))
    grid = (pl.cdiv(rows, tile_rows),)        # ragged last block handled by Pallas

    x2d = x.reshape(rows, cols)               # zero-copy view, no padding
    params = jnp.stack([w, b]).astype(jnp.float32)   # (2,), lands in SMEM

    out2d = pl.pallas_call(
        _fused_affine_kernel,
        out_shape=jax.ShapeDtypeStruct((rows, cols), x.dtype),
        grid=grid,
        in_specs=[
            pl.BlockSpec(memory_space=pltpu.MemorySpace.SMEM),    # [w, b] scalars
            pl.BlockSpec((tile_rows, cols), lambda i: (i, 0)),    # streaming input tile
        ],
        out_specs=pl.BlockSpec((tile_rows, cols), lambda i: (i, 0)),
        compiler_params=pltpu.CompilerParams(
            dimension_semantics=("parallel",),
            vmem_limit_bytes=_VMEM_LIMIT_BYTES,
        ),
    )(params, x2d)

    return out2d.reshape(N, C, H, W)


if __name__ == "__main__":
    key = jax.random.PRNGKey(0)
    k_x1, k_x2, k_x3, k_x4, k_w1, k_b1, k_w2, k_b2 = jax.random.split(key, 8)

    # Conv2d(1, 1, 1) weight / bias are single scalars.
    w1 = jax.random.uniform(k_w1, (), jnp.float32, -1.0, 1.0)
    b1 = jax.random.uniform(k_b1, (), jnp.float32, -1.0, 1.0)
    w2 = jax.random.uniform(k_w2, (), jnp.float32, -1.0, 1.0)
    b2 = jax.random.uniform(k_b2, (), jnp.float32, -1.0, 1.0)

    def ref(x):
        return (x * w1 + b1) * w2 + b2

    # (a) Tiny shape from the original test: fused XLA fast path.
    x_small = jax.random.normal(k_x1, (2, 1, 16, 16), dtype=jnp.float32)
    out = jax.block_until_ready(toy_model_forward(x_small, w1, b1, w2, b2))
    assert out.shape == x_small.shape
    assert jnp.allclose(out, ref(x_small), atol=1e-5), "small-path mismatch"

    # (b) Unaligned shape (no lane-dense zero-copy view): routed to XLA path.
    x_odd = jax.random.normal(k_x2, (2, 1, 17, 19), dtype=jnp.float32)
    out = jax.block_until_ready(toy_model_forward(x_odd, w1, b1, w2, b2))
    assert out.shape == x_odd.shape
    assert jnp.allclose(out, ref(x_odd), atol=1e-5), "odd-shape path mismatch"

    # (c) Lane-aligned shape, forced through the Pallas kernel (cols = W = 128).
    x_forced = jax.random.normal(k_x3, (2, 1, 128, 128), dtype=jnp.float32)
    out = jax.block_until_ready(
        toy_model_forward(x_forced, w1, b1, w2, b2, min_pallas_elems=0))
    assert out.shape == x_forced.shape
    assert jnp.allclose(out, ref(x_forced), atol=1e-5), "forced Pallas path mismatch"

    # (d) Shape above the natural crossover: default Pallas path (cols = 512).
    x_big = jax.random.normal(k_x4, (4, 1, 512, 512), dtype=jnp.float32)
    out = jax.block_until_ready(toy_model_forward(x_big, w1, b1, w2, b2))
    assert out.shape == x_big.shape
    assert jnp.allclose(out, ref(x_big), atol=1e-5), "Pallas path mismatch"

    print("KERNEL_OK")
</pallas_src>

<mosaic_0001>
module attributes {stable_mosaic.version = 11 : i64} {
  func.func @_fused_affine_kernel(%arg0: i32, %arg1: memref<2xf32, #tpu.memory_space<smem>>, %arg2: memref<256x128xf32, #tpu.memory_space<vmem>>, %arg3: memref<256x128xf32, #tpu.memory_space<vmem>>) attributes {dimension_semantics = [#tpu.dimension_semantics<parallel>], iteration_bounds = array<i64: 1>, scalar_prefetch = 0 : i64, scratch_operands = 0 : i64, tpu.core_type = #tpu.core_type<tc>, window_params = [{transform_indices = @transform_0, window_bounds = array<i64: 2>}, {transform_indices = @transform_1, window_bounds = array<i64: 256, 128>}, {transform_indices = @transform_2, window_bounds = array<i64: 256, 128>}]} {
    %c0 = arith.constant 0 : index
    %0 = memref.load %arg1[%c0] : memref<2xf32, #tpu.memory_space<smem>>
    %c1 = arith.constant 1 : index
    %1 = memref.load %arg1[%c1] : memref<2xf32, #tpu.memory_space<smem>>
    %c0_0 = arith.constant 0 : index
    %c0_1 = arith.constant 0 : index
    %2 = vector.load %arg2[%c0_0, %c0_1] : memref<256x128xf32, #tpu.memory_space<vmem>>, vector<256x128xf32>
    %3 = vector.broadcast %0 : f32 to vector<256x128xf32>
    %4 = arith.mulf %2, %3 : vector<256x128xf32>
    %5 = vector.broadcast %1 : f32 to vector<256x128xf32>
    %6 = arith.addf %4, %5 : vector<256x128xf32>
    %c0_2 = arith.constant 0 : index
    %c0_3 = arith.constant 0 : index
    %7 = vector.load %arg3[%c0_2, %c0_3] : memref<256x128xf32, #tpu.memory_space<vmem>>, vector<256x128xf32>
    tpu.vector_store %arg3[%c0_2, %c0_3], %6 {strides = array<i32>} : memref<256x128xf32, #tpu.memory_space<vmem>>, vector<256x128xf32>,
    return
  }
  func.func @transform_0(%arg0: i32) -> i32 {
    %c0_i32 = arith.constant 0 : i32
    %c0_i32_0 = arith.constant 0 : i32
    return %c0_i32 : i32
  }
  func.func @transform_1(%arg0: i32) -> (i32, i32) {
    %c0_i32 = arith.constant 0 : i32
    %c0_i32_0 = arith.constant 0 : i32
    return %arg0, %c0_i32 : i32, i32
  }
  func.func @transform_2(%arg0: i32) -> (i32, i32) {
    %c0_i32 = arith.constant 0 : i32
    %c0_i32_0 = arith.constant 0 : i32
    return %arg0, %c0_i32 : i32, i32
  }
}

</mosaic_0001>

<llo_original>
// kernel: tpu_custom_call.1
$region0: #{tpu_custom_call.1}
  #allocation0 [shape = 'u32[]', space=smem, size = 0x4, offset = 0x4, fixed_abs, tag = 'smem constant byte address 0x4 - core index']
  #allocation1 [shape = 'u32[144,128]{1,0:T(1,128)}', space=vmem, size = 0x12000, scoped, tag = 'internal scratch']
  %s0 = inlined_call_operand.hbm [shape: f32[2], index: 0, kind: input, shape index: {}]
  %s1 = inlined_call_operand.hbm [shape: f32[256,128], index: 1, kind: input, shape index: {}]
  %s2 = inlined_call_operand.hbm [shape: f32[256,128], index: 2, kind: output, shape index: {}]
  %s3 = sld [smem:[#allocation0]]
  $region26: #{tpu_custom_call.1} parent=0
    _
  %s5 = ssub.s32 1, %s3
  %s6 = scalar_select 0, %s5, %s3
  $region1: #{tpu_custom_call.1} parent=0
    #allocation2 [shape = 'u8[512]{0}', space=smem, size = 0x200, scoped, tag = 'input window, operand 0, single buffered']
    #allocation3 [shape = 's32[1]{0}', space=sflag, size = 0x4, scoped, tag = 'scoped memory for tpu_custom_call.1']
    #allocation4 [shape = 's32[1]{0}', space=sflag, size = 0x4, scoped, tag = 'scoped memory for tpu_custom_call.1']
    #allocation5 [shape = 's32[1]{0}', space=sflag, size = 0x4, scoped, tag = 'scoped memory for tpu_custom_call.1']
    #allocation6 [shape = 'u8[131072]{0}', space=vmem, size = 0x20000, scoped, tag = 'input window, operand 1, single buffered']
    #allocation7 [shape = 'u8[131072]{0}', space=vmem, size = 0x20000, scoped, tag = 'output window, operand 0, single buffered']
    %7 = vsyncpa [#allocation5], 0
    %8 = vsyncpa [#allocation3], 0
    %9 = vsyncpa [#allocation4], 0
    // Predicated region
    $region2: #{tpu_custom_call.1} parent=1 // pred_check
      _
    $region3: #{tpu_custom_call.1} parent=1 // pred_check_branch
      %11 = sbr.rel (0) target = $region5
    $region4: #{tpu_custom_call.1} parent=1 // pred_region
      %s13 = ssub.s32 16, 16
      %14 = vsyncadd [#allocation5], %s13
      %17 = dma.hbm_to_smem %s0, 16, [#allocation2], [#allocation5]
    $region5: #{tpu_custom_call.1} parent=1 // pred_fallthru
      _
    // Predicated region
    $region6: #{tpu_custom_call.1} parent=1 // pred_check
      _
    $region7: #{tpu_custom_call.1} parent=1 // pred_check_branch
      %19 = sbr.rel (0) target = $region9
    $region8: #{tpu_custom_call.1} parent=1 // pred_region
      %s21 = ssub.s32 4096, 4096
      %22 = vsyncadd [#allocation3], %s21
      %s23 = sshll.u32 [#allocation6], 4
      %s24 = int_to_ptr.vmem [resolvable:$true] %s23
      %29 = dma.hbm_to_vmem [thread:$0]  %s1, 4096, %s24, [#allocation3], 128, 128, 8
    $region9: #{tpu_custom_call.1} parent=1 // pred_fallthru
      _
    // Predicated region
    $region10: #{tpu_custom_call.1} parent=1 // pred_check
      _
    $region11: #{tpu_custom_call.1} parent=1 // pred_check_branch
      %31 = sbr.rel (0) target = $region13
    $region12: #{tpu_custom_call.1} parent=1 // pred_region
      %32 = dma.done [#allocation5], 16
    $region13: #{tpu_custom_call.1} parent=1 // pred_fallthru
      _
    // Predicated region
    $region14: #{tpu_custom_call.1} parent=1 // pred_check
      _
    $region15: #{tpu_custom_call.1} parent=1 // pred_check_branch
      %34 = sbr.rel (0) target = $region17
    $region16: #{tpu_custom_call.1} parent=1 // pred_region
      %35 = dma.done [#allocation3], 4096
    $region17: #{tpu_custom_call.1} parent=1 // pred_fallthru
      _
    %36 = sfence
    %s37 = sld [smem:[#allocation2]]
    %s38 = sld [smem:[#allocation2 + $0x1]]
    %v39 = vld [vmem:[#allocation6] sm:$0xff]
    %v40 = vld [vmem:[#allocation6 + $0x8] sm:$0xff]
    %v41 = vld [vmem:[#allocation6 + $0x10] sm:$0xff]
    %v42 = vld [vmem:[#allocation6 + $0x18] sm:$0xff]
    %v43 = vld [vmem:[#allocation6 + $0x20] sm:$0xff]
    %v44 = vld [vmem:[#allocation6 + $0x28] sm:$0xff]
    %v45 = vld [vmem:[#allocation6 + $0x30] sm:$0xff]
    %v46 = vld [vmem:[#allocation6 + $0x38] sm:$0xff]
    %v47 = vld [vmem:[#allocation6 + $0x40] sm:$0xff]
    %v48 = vld [vmem:[#allocation6 + $0x48] sm:$0xff]
    %v49 = vld [vmem:[#allocation6 + $0x50] sm:$0xff]
    %v50 = vld [vmem:[#allocation6 + $0x58] sm:$0xff]
    %v51 = vld [vmem:[#allocation6 + $0x60] sm:$0xff]
    %v52 = vld [vmem:[#allocation6 + $0x68] sm:$0xff]
    %v53 = vld [vmem:[#allocation6 + $0x70] sm:$0xff]
    %v54 = vld [vmem:[#allocation6 + $0x78] sm:$0xff]
    %v55 = vld [vmem:[#allocation6 + $0x80] sm:$0xff]
    %v56 = vld [vmem:[#allocation6 + $0x88] sm:$0xff]
    %v57 = vld [vmem:[#allocation6 + $0x90] sm:$0xff]
    %v58 = vld [vmem:[#allocation6 + $0x98] sm:$0xff]
    %v59 = vld [vmem:[#allocation6 + $0xa0] sm:$0xff]
    %v60 = vld [vmem:[#allocation6 + $0xa8] sm:$0xff]
    %v61 = vld [vmem:[#allocation6 + $0xb0] sm:$0xff]
    %v62 = vld [vmem:[#allocation6 + $0xb8] sm:$0xff]
    %v63 = vld [vmem:[#allocation6 + $0xc0] sm:$0xff]
    %v64 = vld [vmem:[#allocation6 + $0xc8] sm:$0xff]
    %v65 = vld [vmem:[#allocation6 + $0xd0] sm:$0xff]
    %v66 = vld [vmem:[#allocation6 + $0xd8] sm:$0xff]
    %v67 = vld [vmem:[#allocation6 + $0xe0] sm:$0xff]
    %v68 = vld [vmem:[#allocation6 + $0xe8] sm:$0xff]
    %v69 = vld [vmem:[#allocation6 + $0xf0] sm:$0xff]
    %v70 = vld [vmem:[#allocation6 + $0xf8] sm:$0xff]
    %v71 = vstv %s37
    %v72 = vmul.f32 %v39, %v71
    %v73 = vmul.f32 %v40, %v71
    %v74 = vmul.f32 %v41, %v71
    %v75 = vmul.f32 %v42, %v71
    %v76 = vmul.f32 %v43, %v71
    %v77 = vmul.f32 %v44, %v71
    %v78 = vmul.f32 %v45, %v71
    %v79 = vmul.f32 %v46, %v71
    %v80 = vmul.f32 %v47, %v71
    %v81 = vmul.f32 %v48, %v71
    %v82 = vmul.f32 %v49, %v71
    %v83 = vmul.f32 %v50, %v71
    %v84 = vmul.f32 %v51, %v71
    %v85 = vmul.f32 %v52, %v71
    %v86 = vmul.f32 %v53, %v71
    %v87 = vmul.f32 %v54, %v71
    %v88 = vmul.f32 %v55, %v71
    %v89 = vmul.f32 %v56, %v71
    %v90 = vmul.f32 %v57, %v71
    %v91 = vmul.f32 %v58, %v71
    %v92 = vmul.f32 %v59, %v71
    %v93 = vmul.f32 %v60, %v71
    %v94 = vmul.f32 %v61, %v71
    %v95 = vmul.f32 %v62, %v71
    %v96 = vmul.f32 %v63, %v71
    %v97 = vmul.f32 %v64, %v71
    %v98 = vmul.f32 %v65, %v71
    %v99 = vmul.f32 %v66, %v71
    %v100 = vmul.f32 %v67, %v71
    %v101 = vmul.f32 %v68, %v71
    %v102 = vmul.f32 %v69, %v71
    %v103 = vmul.f32 %v70, %v71
    %v104 = vstv %s38
    %v105 = vadd.f32 %v72, %v104
    %v106 = vadd.f32 %v73, %v104
    %v107 = vadd.f32 %v74, %v104
    %v108 = vadd.f32 %v75, %v104
    %v109 = vadd.f32 %v76, %v104
    %v110 = vadd.f32 %v77, %v104
    %v111 = vadd.f32 %v78, %v104
    %v112 = vadd.f32 %v79, %v104
    %v113 = vadd.f32 %v80, %v104
    %v114 = vadd.f32 %v81, %v104
    %v115 = vadd.f32 %v82, %v104
    %v116 = vadd.f32 %v83, %v104
    %v117 = vadd.f32 %v84, %v104
    %v118 = vadd.f32 %v85, %v104
    %v119 = vadd.f32 %v86, %v104
    %v120 = vadd.f32 %v87, %v104
    %v121 = vadd.f32 %v88, %v104
    %v122 = vadd.f32 %v89, %v104
    %v123 = vadd.f32 %v90, %v104
    %v124 = vadd.f32 %v91, %v104
    %v125 = vadd.f32 %v92, %v104
    %v126 = vadd.f32 %v93, %v104
    %v127 = vadd.f32 %v94, %v104
    %v128 = vadd.f32 %v95, %v104
    %v129 = vadd.f32 %v96, %v104
    %v130 = vadd.f32 %v97, %v104
    %v131 = vadd.f32 %v98, %v104
    %v132 = vadd.f32 %v99, %v104
    %v133 = vadd.f32 %v100, %v104
    %v134 = vadd.f32 %v101, %v104
    %v135 = vadd.f32 %v102, %v104
    %v136 = vadd.f32 %v103, %v104
    %137 = vst [vmem:[#allocation7] sm:$0xff] %v105
    %138 = vst [vmem:[#allocation7 + $0x8] sm:$0xff] %v106
    %139 = vst [vmem:[#allocation7 + $0x10] sm:$0xff] %v107
    %140 = vst [vmem:[#allocation7 + $0x18] sm:$0xff] %v108
    %141 = vst [vmem:[#allocation7 + $0x20] sm:$0xff] %v109
    %142 = vst [vmem:[#allocation7 + $0x28] sm:$0xff] %v110
    %143 = vst [vmem:[#allocation7 + $0x30] sm:$0xff] %v111
    %144 = vst [vmem:[#allocation7 + $0x38] sm:$0xff] %v112
    %145 = vst [vmem:[#allocation7 + $0x40] sm:$0xff] %v113
    %146 = vst [vmem:[#allocation7 + $0x48] sm:$0xff] %v114
    %147 = vst [vmem:[#allocation7 + $0x50] sm:$0xff] %v115
    %148 = vst [vmem:[#allocation7 + $0x58] sm:$0xff] %v116
    %149 = vst [vmem:[#allocation7 + $0x60] sm:$0xff] %v117
    %150 = vst [vmem:[#allocation7 + $0x68] sm:$0xff] %v118
    %151 = vst [vmem:[#allocation7 + $0x70] sm:$0xff] %v119
    %152 = vst [vmem:[#allocation7 + $0x78] sm:$0xff] %v120
    %153 = vst [vmem:[#allocation7 + $0x80] sm:$0xff] %v121
    %154 = vst [vmem:[#allocation7 + $0x88] sm:$0xff] %v122
    %155 = vst [vmem:[#allocation7 + $0x90] sm:$0xff] %v123
    %156 = vst [vmem:[#allocation7 + $0x98] sm:$0xff] %v124
    %157 = vst [vmem:[#allocation7 + $0xa0] sm:$0xff] %v125
    %158 = vst [vmem:[#allocation7 + $0xa8] sm:$0xff] %v126
    %159 = vst [vmem:[#allocation7 + $0xb0] sm:$0xff] %v127
    %160 = vst [vmem:[#allocation7 + $0xb8] sm:$0xff] %v128
    %161 = vst [vmem:[#allocation7 + $0xc0] sm:$0xff] %v129
    %162 = vst [vmem:[#allocation7 + $0xc8] sm:$0xff] %v130
    %163 = vst [vmem:[#allocation7 + $0xd0] sm:$0xff] %v131
    %164 = vst [vmem:[#allocation7 + $0xd8] sm:$0xff] %v132
    %165 = vst [vmem:[#allocation7 + $0xe0] sm:$0xff] %v133
    %166 = vst [vmem:[#allocation7 + $0xe8] sm:$0xff] %v134
    %167 = vst [vmem:[#allocation7 + $0xf0] sm:$0xff] %v135
    %168 = vst [vmem:[#allocation7 + $0xf8] sm:$0xff] %v136
    // Predicated region
    $region18: #{tpu_custom_call.1} parent=1 // pred_check
      _
    $region19: #{tpu_custom_call.1} parent=1 // pred_check_branch
      %170 = sbr.rel (0) target = $region21
    $region20: #{tpu_custom_call.1} parent=1 // pred_region
      %s172 = ssub.s32 4096, 4096
      %173 = vsyncadd [#allocation4], %s172
      %s174 = sshll.u32 [#allocation7], 4
      %s175 = int_to_ptr.vmem [resolvable:$true] %s174
      %180 = dma.vmem_to_hbm [thread:$0]  %s175, 4096, %s2, [#allocation4], 128, 128, 8
    $region21: #{tpu_custom_call.1} parent=1 // pred_fallthru
      _
    // Predicated region
    $region22: #{tpu_custom_call.1} parent=1 // pred_check
      _
    $region23: #{tpu_custom_call.1} parent=1 // pred_check_branch
      %182 = sbr.rel (0) target = $region25
    $region24: #{tpu_custom_call.1} parent=1 // pred_region
      %183 = dma.done [#allocation4], 4096
    $region25: #{tpu_custom_call.1} parent=1 // pred_fallthru
      _
    %184 = vsyncpa [#allocation3], 1
    %185 = vsyncpa [#allocation4], 1
    %186 = vsyncpa [#allocation5], 1

</llo_original>
